<compile_context>
chip_gen: v7x
topology: tpu7x:2x2x1
jax: 0.10.0
libtpu: 0.0.40
codegen_flags: <defaults>
</compile_context>

<pallas_src>
import jax
import jax.numpy as jnp
from jax.experimental import pallas as pl
from jax.experimental.pallas import tpu as pltpu


# ~1 MiB of f32 per array per block (per-grid-step overhead amortized, still
# far under the default scoped VMEM limit on v5e/v6e/v7x when double-buffered).
_TARGET_BLOCK_ELEMS = 256 * 1024


def _reparam_kernel(mu_ref, logvar_ref, eps_ref, z_ref):
    # z = eps * exp(0.5 * logvar) + mu    (EUP exp, VPU mul/add)
    std = jnp.exp(0.5 * logvar_ref[...])
    z_ref[...] = eps_ref[...] * std + mu_ref[...]


def _pick_lanes(total):
    """Widest lane count (multiple of 128) that divides `total`, else pad to 128."""
    for cand in (1024, 512, 256, 128):
        if total % cand == 0:
            return cand, total
    lanes = 128
    padded = -(-total // lanes) * lanes
    return lanes, padded


def reparametrize(mu, logvar, seed=0):
    """z = N(0,1) * exp(0.5*logvar) + mu, fused in a Pallas TPU kernel."""
    assert mu.shape == logvar.shape
    orig_shape = mu.shape
    total = mu.size

    mu_f = mu if mu.dtype == jnp.float32 else mu.astype(jnp.float32)
    lv_f = logvar if logvar.dtype == jnp.float32 else logvar.astype(jnp.float32)

    lanes, padded_total = _pick_lanes(total)

    mu_flat = jnp.reshape(mu_f, (-1,))
    lv_flat = jnp.reshape(lv_f, (-1,))
    if padded_total != total:
        # TODO(synk): handle the ragged tail with an in-kernel mask instead of
        # wrapper-side padding (adds HBM traffic); the common VAE latent sizes
        # (multiples of 128) never hit this branch.
        pad = padded_total - total
        mu_flat = jnp.pad(mu_flat, (0, pad))
        lv_flat = jnp.pad(lv_flat, (0, pad))

    rows = padded_total // lanes
    mu2d = mu_flat.reshape(rows, lanes)
    lv2d = lv_flat.reshape(rows, lanes)

    # Standard-normal noise, streamed into the kernel as a regular operand.
    eps = jax.random.normal(jax.random.PRNGKey(seed), (rows, lanes),
                            dtype=jnp.float32)

    # Block sizing: full slab if small, otherwise ~1 MiB f32 blocks whose row
    # count is a multiple of 8 sublanes (last block may be partial; harmless
    # for an elementwise op).
    target_rows = max(8, _TARGET_BLOCK_ELEMS // lanes)
    if rows <= target_rows:
        block_rows = rows
        grid = (1,)
    else:
        block_rows = target_rows
        grid = (pl.cdiv(rows, block_rows),)

    block_spec = pl.BlockSpec((block_rows, lanes), lambda i: (i, 0))

    z2d = pl.pallas_call(
        _reparam_kernel,
        out_shape=jax.ShapeDtypeStruct((rows, lanes), jnp.float32),
        grid=grid,
        in_specs=[block_spec, block_spec, block_spec],   # mu, logvar, eps
        out_specs=block_spec,
        compiler_params=pltpu.CompilerParams(
            dimension_semantics=("parallel",)),          # shard rows on v7x's 2 TCs
        cost_estimate=pl.CostEstimate(
            flops=3 * padded_total,                      # mul*2-ish + add
            transcendentals=padded_total,                # exp
            bytes_accessed=16 * padded_total),           # 3 reads + 1 write, f32
    )(mu2d, lv2d, eps)

    if padded_total != total:
        return z2d.reshape(-1)[:total].reshape(orig_shape)
    return z2d.reshape(orig_shape)


if __name__ == "__main__":
    key = jax.random.PRNGKey(0)
    k_mu, k_lv = jax.random.split(key)
    # Small NCHW-shaped latents (e.g. a conv-VAE latent map): B=2, C=4, H=W=16
    mu = jax.random.normal(k_mu, (2, 4, 16, 16), dtype=jnp.float32)
    logvar = jax.random.normal(k_lv, (2, 4, 16, 16), dtype=jnp.float32) * 0.1

    z = reparametrize(mu, logvar, seed=0)
    z = jax.block_until_ready(z)

    # Sanity: shape/dtype match, values finite, recovered noise ~ N(0,1).
    assert z.shape == mu.shape and z.dtype == jnp.float32
    assert bool(jnp.all(jnp.isfinite(z)))
    eps_recovered = (z - mu) / jnp.exp(0.5 * logvar)
    assert abs(float(jnp.mean(eps_recovered))) < 0.2
    assert 0.7 < float(jnp.std(eps_recovered)) < 1.3

    print("KERNEL_OK")
</pallas_src>

<mosaic_0001>
module attributes {stable_mosaic.version = 11 : i64} {
  func.func @_reparam_kernel(%arg0: i32, %arg1: memref<2x1024xf32, #tpu.memory_space<vmem>>, %arg2: memref<2x1024xf32, #tpu.memory_space<vmem>>, %arg3: memref<2x1024xf32, #tpu.memory_space<vmem>>, %arg4: memref<2x1024xf32, #tpu.memory_space<vmem>>) attributes {dimension_semantics = [#tpu.dimension_semantics<parallel>], iteration_bounds = array<i64: 1>, scalar_prefetch = 0 : i64, scratch_operands = 0 : i64, tpu.core_type = #tpu.core_type<tc>, window_params = [{transform_indices = @transform_0, window_bounds = array<i64: 2, 1024>}, {transform_indices = @transform_1, window_bounds = array<i64: 2, 1024>}, {transform_indices = @transform_2, window_bounds = array<i64: 2, 1024>}, {transform_indices = @transform_3, window_bounds = array<i64: 2, 1024>}]} {
    %c0 = arith.constant 0 : index
    %c0_0 = arith.constant 0 : index
    %0 = vector.load %arg2[%c0, %c0_0] : memref<2x1024xf32, #tpu.memory_space<vmem>>, vector<2x1024xf32>
    %cst = arith.constant 5.000000e-01 : f32
    %1 = vector.broadcast %cst : f32 to vector<2x1024xf32>
    %2 = arith.mulf %1, %0 : vector<2x1024xf32>
    %3 = math.exp %2 : vector<2x1024xf32>
    %c0_1 = arith.constant 0 : index
    %c0_2 = arith.constant 0 : index
    %4 = vector.load %arg3[%c0_1, %c0_2] : memref<2x1024xf32, #tpu.memory_space<vmem>>, vector<2x1024xf32>
    %5 = arith.mulf %4, %3 : vector<2x1024xf32>
    %c0_3 = arith.constant 0 : index
    %c0_4 = arith.constant 0 : index
    %6 = vector.load %arg1[%c0_3, %c0_4] : memref<2x1024xf32, #tpu.memory_space<vmem>>, vector<2x1024xf32>
    %7 = arith.addf %5, %6 : vector<2x1024xf32>
    %c0_5 = arith.constant 0 : index
    %c0_6 = arith.constant 0 : index
    %8 = vector.load %arg4[%c0_5, %c0_6] : memref<2x1024xf32, #tpu.memory_space<vmem>>, vector<2x1024xf32>
    tpu.vector_store %arg4[%c0_5, %c0_6], %7 {strides = array<i32>} : memref<2x1024xf32, #tpu.memory_space<vmem>>, vector<2x1024xf32>,
    return
  }
  func.func @transform_0(%arg0: i32) -> (i32, i32) {
    %c0_i32 = arith.constant 0 : i32
    %c0_i32_0 = arith.constant 0 : i32
    return %arg0, %c0_i32 : i32, i32
  }
  func.func @transform_1(%arg0: i32) -> (i32, i32) {
    %c0_i32 = arith.constant 0 : i32
    %c0_i32_0 = arith.constant 0 : i32
    return %arg0, %c0_i32 : i32, i32
  }
  func.func @transform_2(%arg0: i32) -> (i32, i32) {
    %c0_i32 = arith.constant 0 : i32
    %c0_i32_0 = arith.constant 0 : i32
    return %arg0, %c0_i32 : i32, i32
  }
  func.func @transform_3(%arg0: i32) -> (i32, i32) {
    %c0_i32 = arith.constant 0 : i32
    %c0_i32_0 = arith.constant 0 : i32
    return %arg0, %c0_i32 : i32, i32
  }
}

</mosaic_0001>

<llo_original>
// kernel: tpu_custom_call.1
$region0: #{tpu_custom_call.1}
  #allocation0 [shape = 'u32[]', space=smem, size = 0x4, offset = 0x4, fixed_abs, tag = 'smem constant byte address 0x4 - core index']
  #allocation1 [shape = 'u32[144,128]{1,0:T(1,128)}', space=vmem, size = 0x12000, scoped, tag = 'internal scratch']
  %s0 = inlined_call_operand.hbm [shape: f32[2,1024], index: 0, kind: input, shape index: {}]
  %s1 = inlined_call_operand.hbm [shape: f32[2,1024], index: 1, kind: input, shape index: {}]
  %s2 = inlined_call_operand.hbm [shape: f32[2,1024], index: 2, kind: input, shape index: {}]
  %s3 = inlined_call_operand.hbm [shape: f32[2,1024], index: 3, kind: output, shape index: {}]
  %s4 = sld [smem:[#allocation0]]
  $region34: #{tpu_custom_call.1} parent=0
    _
  %s6 = ssub.s32 1, %s4
  %s7 = scalar_select 0, %s6, %s4
  $region1: #{tpu_custom_call.1} parent=0
    #allocation2 [shape = 'u8[8192]{0}', space=vmem, size = 0x2000, scoped, tag = 'input window, operand 0, single buffered']
    #allocation3 [shape = 's32[1]{0}', space=sflag, size = 0x4, scoped, tag = 'scoped memory for tpu_custom_call.1']
    #allocation4 [shape = 's32[1]{0}', space=sflag, size = 0x4, scoped, tag = 'scoped memory for tpu_custom_call.1']
    #allocation5 [shape = 'u8[8192]{0}', space=vmem, size = 0x2000, scoped, tag = 'input window, operand 1, single buffered']
    #allocation6 [shape = 's32[1]{0}', space=sflag, size = 0x4, scoped, tag = 'scoped memory for tpu_custom_call.1']
    #allocation7 [shape = 'u8[8192]{0}', space=vmem, size = 0x2000, scoped, tag = 'input window, operand 2, single buffered']
    #allocation8 [shape = 'u8[8192]{0}', space=vmem, size = 0x2000, scoped, tag = 'output window, operand 0, single buffered']
    %8 = vsyncpa [#allocation3], 0
    %9 = vsyncpa [#allocation6], 0
    %10 = vsyncpa [#allocation4], 0
    // Predicated region
    $region2: #{tpu_custom_call.1} parent=1 // pred_check
      _
    $region3: #{tpu_custom_call.1} parent=1 // pred_check_branch
      %12 = sbr.rel (0) target = $region5
    $region4: #{tpu_custom_call.1} parent=1 // pred_region
      %s14 = ssub.s32 256, 256
      %15 = vsyncadd [#allocation3], %s14
      %s17 = sshll.u32 [#allocation2], 4
      %s18 = int_to_ptr.vmem [resolvable:$true] %s17
      %20 = dma.hbm_to_vmem [thread:$0]  %s0, 256, %s18, [#allocation3]
    $region5: #{tpu_custom_call.1} parent=1 // pred_fallthru
      _
    // Predicated region
    $region6: #{tpu_custom_call.1} parent=1 // pred_check
      _
    $region7: #{tpu_custom_call.1} parent=1 // pred_check_branch
      %22 = sbr.rel (0) target = $region9
    $region8: #{tpu_custom_call.1} parent=1 // pred_region
      %s24 = ssub.s32 256, 256
      %25 = vsyncadd [#allocation6], %s24
      %s27 = sshll.u32 [#allocation5], 4
      %s28 = int_to_ptr.vmem [resolvable:$true] %s27
      %30 = dma.hbm_to_vmem [thread:$0]  %s1, 256, %s28, [#allocation6]
    $region9: #{tpu_custom_call.1} parent=1 // pred_fallthru
      _
    // Predicated region
    $region10: #{tpu_custom_call.1} parent=1 // pred_check
      _
    $region11: #{tpu_custom_call.1} parent=1 // pred_check_branch
      %32 = sbr.rel (0) target = $region13
    $region12: #{tpu_custom_call.1} parent=1 // pred_region
      %s34 = ssub.s32 256, 256
      %35 = vsyncadd [#allocation6], %s34
      %s37 = sshll.u32 [#allocation7], 4
      %s38 = int_to_ptr.vmem [resolvable:$true] %s37
      %40 = dma.hbm_to_vmem [thread:$0]  %s2, 256, %s38, [#allocation6]
    $region13: #{tpu_custom_call.1} parent=1 // pred_fallthru
      _
    // Predicated region
    $region14: #{tpu_custom_call.1} parent=1 // pred_check
      _
    $region15: #{tpu_custom_call.1} parent=1 // pred_check_branch
      %42 = sbr.rel (0) target = $region17
    $region16: #{tpu_custom_call.1} parent=1 // pred_region
      %43 = dma.done [#allocation3], 256
    $region17: #{tpu_custom_call.1} parent=1 // pred_fallthru
      _
    // Predicated region
    $region18: #{tpu_custom_call.1} parent=1 // pred_check
      _
    $region19: #{tpu_custom_call.1} parent=1 // pred_check_branch
      %45 = sbr.rel (0) target = $region21
    $region20: #{tpu_custom_call.1} parent=1 // pred_region
      %46 = dma.done [#allocation6], 256
    $region21: #{tpu_custom_call.1} parent=1 // pred_fallthru
      _
    // Predicated region
    $region22: #{tpu_custom_call.1} parent=1 // pred_check
      _
    $region23: #{tpu_custom_call.1} parent=1 // pred_check_branch
      %48 = sbr.rel (0) target = $region25
    $region24: #{tpu_custom_call.1} parent=1 // pred_region
      %49 = dma.done [#allocation6], 256
    $region25: #{tpu_custom_call.1} parent=1 // pred_fallthru
      _
    %v50 = vld [vmem:[#allocation5] sm:$0xff]
    %v51 = vld [vmem:[#allocation5 + $0x8] sm:$0xff]
    %v52 = vmul.f32 %v50, 0.5
    %v53 = vmul.f32 %v51, 0.5
    %v54 = vmul.f32 %v52, 1.442695
    %v55 = vpow.pop %v54
    %v56 = vmul.f32 %v53, 1.442695
    %v57 = vpow.pop %v56
    %v58 = vld [vmem:[#allocation7] sm:$0xff]
    %v59 = vld [vmem:[#allocation7 + $0x8] sm:$0xff]
    %v60 = vmul.f32 %v58, %v55
    %v61 = vmul.f32 %v59, %v57
    %v62 = vld [vmem:[#allocation2] sm:$0xff]
    %v63 = vld [vmem:[#allocation2 + $0x8] sm:$0xff]
    %v64 = vadd.f32 %v60, %v62
    %v65 = vadd.f32 %v61, %v63
    %66 = vst [vmem:[#allocation8] sm:$0xff] %v64
    %67 = vst [vmem:[#allocation8 + $0x8] sm:$0xff] %v65
    // Predicated region
    $region26: #{tpu_custom_call.1} parent=1 // pred_check
      _
    $region27: #{tpu_custom_call.1} parent=1 // pred_check_branch
      %69 = sbr.rel (0) target = $region29
    $region28: #{tpu_custom_call.1} parent=1 // pred_region
      %s71 = ssub.s32 256, 256
      %72 = vsyncadd [#allocation4], %s71
      %s74 = sshll.u32 [#allocation8], 4
      %s75 = int_to_ptr.vmem [resolvable:$true] %s74
      %77 = dma.vmem_to_hbm [thread:$0]  %s75, 256, %s3, [#allocation4]
    $region29: #{tpu_custom_call.1} parent=1 // pred_fallthru
      _
    // Predicated region
    $region30: #{tpu_custom_call.1} parent=1 // pred_check
      _
    $region31: #{tpu_custom_call.1} parent=1 // pred_check_branch
      %79 = sbr.rel (0) target = $region33
    $region32: #{tpu_custom_call.1} parent=1 // pred_region
      %80 = dma.done [#allocation4], 256
    $region33: #{tpu_custom_call.1} parent=1 // pred_fallthru
      _
    %81 = vsyncpa [#allocation3], 1
    %82 = vsyncpa [#allocation6], 1
    %83 = vsyncpa [#allocation4], 1

</llo_original>
